<compile_context>
chip_gen: v5e
topology: v5e:2x2
jax: 0.10.0
libtpu: 0.0.40
codegen_flags: <defaults>
</compile_context>

<pallas_src>
import jax
import jax.numpy as jnp
from jax.experimental import pallas as pl
from jax.experimental.pallas import tpu as pltpu


def _round_up(x, m):
    return (x + m - 1) // m * m


def odenet_kernel(*refs):
    """refs = (tc, y, w_hyper, h_const, W_0..W_{L-1}, out).

    tc      : (Bb, cond)       f32  batch tile of concat([t, cond]) features
    y       : (Bb, d_in)       f32  batch tile of the state
    w_hyper : (H, cond)        f32  per layer: [Wg^T ; Wb^T ; 0] row segments, each padded to 8
    h_const : (H, 1)           f32  per layer: [bg ; 0 ; b]  (hyper-gate bias and main bias)
    W_l     : (d_out, d_prev)  f32  main weights, pre-transposed
    out     : (Bb, d_out_last) f32
    """
    tc_ref, y_ref, wh_ref, hc_ref = refs[0], refs[1], refs[2], refs[3]
    out_ref = refs[-1]
    w_refs = refs[4:-1]
    n_layers = len(w_refs)

    # One fused MXU pass for every tc-dependent projection of every layer:
    #   hyper[row, b] = sum_c w_hyper[row, c] * tc[b, c] + h_const[row, 0]
    # NT contraction keeps batch on the lane axis with no explicit transpose of tc.
    hyper = jax.lax.dot_general(
        wh_ref[...], tc_ref[...],
        dimension_numbers=(((1,), (1,)), ((), ())),
        preferred_element_type=jnp.float32,
    ) + hc_ref[...]                                            # (H, Bb) f32, lane-dense in batch

    dx = None
    off = 0
    for l in range(n_layers):
        w = w_refs[l][...]                                     # (d_out, d_prev)
        d_out = w.shape[0]
        d_pad = _round_up(d_out, 8)

        if l == 0:
            # First layer consumes y directly in its (Bb, d_in) layout (NT contraction).
            lin = jax.lax.dot_general(
                w, y_ref[...],
                dimension_numbers=(((1,), (1,)), ((), ())),
                preferred_element_type=jnp.float32)            # (d_out, Bb)
        else:
            lin = jnp.dot(w, dx, preferred_element_type=jnp.float32)

        gate_logit = hyper[off:off + d_out, :]
        hbias = hyper[off + d_pad:off + d_pad + d_out, :]
        bmain = hyper[off + 2 * d_pad:off + 2 * d_pad + d_out, :]   # = b_l broadcast over batch
        off += 3 * d_pad

        # sigmoid via tanh: one EUP push, no exp overflow for large |logit|.
        gate = 0.5 * jnp.tanh(0.5 * gate_logit) + 0.5
        dx = (lin + bmain) * gate + hbias
        if l < n_layers - 1:
            # softplus(beta=1), stable form (matches torch Softplus threshold=20 to rounding).
            dx = jnp.maximum(dx, 0.0) + jnp.log(1.0 + jnp.exp(-jnp.abs(dx)))

    # (d_out_last, Bb) -> (Bb, d_out_last): tiny in-kernel transpose keeps the wrapper slice-free.
    out_ref[...] = dx.T.astype(out_ref.dtype)


def init_params(key, dim_in, hidden_dims, cond_dims):
    """Deterministic init mimicking nn.Linear default (uniform +/- 1/sqrt(fan_in))."""
    dims = list(hidden_dims) + [dim_in]
    params = []
    d_prev = dim_in
    for d_out in dims:
        key, k1, k2, k3, k4, k5 = jax.random.split(key, 6)
        s_main = 1.0 / jnp.sqrt(d_prev)
        s_hyp = 1.0 / jnp.sqrt(cond_dims)
        W = jax.random.uniform(k1, (d_prev, d_out), jnp.float32, -s_main, s_main)
        b = jax.random.uniform(k2, (1, d_out), jnp.float32, -s_main, s_main)
        Wg = jax.random.uniform(k3, (cond_dims, d_out), jnp.float32, -s_hyp, s_hyp)
        bg = jax.random.uniform(k4, (1, d_out), jnp.float32, -s_hyp, s_hyp)
        Wb = jax.random.uniform(k5, (cond_dims, d_out), jnp.float32, -s_hyp, s_hyp)
        params.extend([W, b, Wg, bg, Wb])
        d_prev = d_out
    return params


def _pack_params(params, cond_dims):
    """Pack torch-layout params into kernel layout.

    Returns:
      w_hyper : (H, cond) f32 — per layer, [Wg^T], [Wb^T], [0], each padded to 8 rows.
      h_const : (H, 1)    f32 — per layer, [bg], [0], [b] in the same row layout.
      w_list  : [W^T f32 (d_out, d_prev)] per layer.
    """
    n_layers = len(params) // 5
    wh_rows, hc_rows, w_list = [], [], []
    for l in range(n_layers):
        W, b, Wg, bg, Wb = params[5 * l:5 * l + 5]
        d_out = W.shape[1]
        d_pad = _round_up(d_out, 8)
        gate_w = jnp.zeros((d_pad, cond_dims), jnp.float32).at[:d_out].set(Wg.T)
        gate_c = jnp.zeros((d_pad, 1), jnp.float32).at[:d_out, 0].set(bg[0])
        hb_w = jnp.zeros((d_pad, cond_dims), jnp.float32).at[:d_out].set(Wb.T)
        hb_c = jnp.zeros((d_pad, 1), jnp.float32)
        bm_w = jnp.zeros((d_pad, cond_dims), jnp.float32)
        bm_c = jnp.zeros((d_pad, 1), jnp.float32).at[:d_out, 0].set(b[0])
        wh_rows += [gate_w, hb_w, bm_w]
        hc_rows += [gate_c, hb_c, bm_c]
        w_list.append(W.T.astype(jnp.float32))
    return (jnp.concatenate(wh_rows, axis=0),
            jnp.concatenate(hc_rows, axis=0),
            w_list)


@jax.jit
def odenet_forward(tc, y, params):
    """tc: (B, cond) f32, y: (B, dim_in) f32, params: flat tuple of per-layer
    (W, b, Wg, bg, Wb). Returns (B, dim_out) f32."""
    B, cond = tc.shape
    dim_in = y.shape[1]
    n_layers = len(params) // 5
    dim_out = params[5 * (n_layers - 1)].shape[1]

    w_hyper, h_const, w_list = _pack_params(params, cond)

    # Large lane-dense batch tiles amortize the ~0.35us/step grid overhead. Cap at 4096 so the
    # lane-padded VMEM images of the skinny (Bb, <=5) I/O blocks (~2 MiB each at 4096, double
    # buffered) plus the (H, Bb) hyper slab stay well under the 32 MiB scoped-VMEM limit below.
    block_b = min(4096, _round_up(B, 128))
    b_pad = _round_up(B, block_b)

    tc_p = tc.astype(jnp.float32)
    y_p = y.astype(jnp.float32)
    if b_pad != B:
        # Padded batch rows are all-zero: their gate/bias values are finite garbage that is
        # sliced off below — do not read the padded region for anything else.
        tc_p = jnp.pad(tc_p, ((0, b_pad - B), (0, 0)))
        y_p = jnp.pad(y_p, ((0, b_pad - B), (0, 0)))

    grid = (b_pad // block_b,)
    in_specs = (
        [pl.BlockSpec((block_b, cond), lambda i: (i, 0)),
         pl.BlockSpec((block_b, dim_in), lambda i: (i, 0)),
         # Constant block index -> parameters stay VMEM-resident across grid steps.
         pl.BlockSpec(w_hyper.shape, lambda i: (0, 0)),
         pl.BlockSpec(h_const.shape, lambda i: (0, 0))]
        + [pl.BlockSpec(w.shape, lambda i: (0, 0)) for w in w_list]
    )
    out_spec = pl.BlockSpec((block_b, dim_out), lambda i: (i, 0))

    out = pl.pallas_call(
        odenet_kernel,
        out_shape=jax.ShapeDtypeStruct((b_pad, dim_out), jnp.float32),
        grid=grid,
        in_specs=in_specs,
        out_specs=out_spec,
        compiler_params=pltpu.CompilerParams(
            dimension_semantics=("parallel",),
            vmem_limit_bytes=32 * 1024 * 1024,
        ),
    )(tc_p, y_p, w_hyper, h_const, *w_list)

    return out[:B] if b_pad != B else out


def odenet_reference(tc, y, params):
    """Pure-JAX f32 reference of the ConcatSquash MLP."""
    n_layers = len(params) // 5
    dx = y.astype(jnp.float32)
    tcf = tc.astype(jnp.float32)
    for l in range(n_layers):
        W, b, Wg, bg, Wb = params[5 * l:5 * l + 5]
        lin = jnp.dot(dx, W, preferred_element_type=jnp.float32) + b
        gate = jax.nn.sigmoid(jnp.dot(tcf, Wg, preferred_element_type=jnp.float32) + bg)
        hbias = jnp.dot(tcf, Wb, preferred_element_type=jnp.float32)
        dx = lin * gate + hbias
        if l < n_layers - 1:
            dx = jnp.maximum(dx, 0.0) + jnp.log(1.0 + jnp.exp(-jnp.abs(dx)))
    return dx


if __name__ == "__main__":
    B = 2               # batch
    dim_in = 4          # input_shape = (4,)
    hidden_dims = (32, 32)
    cond_dims = 5       # tc = concat([t, cond]) -> 5 features

    key = jax.random.PRNGKey(0)
    k_tc, k_y, k_p = jax.random.split(key, 3)
    tc = jax.random.normal(k_tc, (B, cond_dims), jnp.float32)
    y = jax.random.normal(k_y, (B, dim_in), jnp.float32)
    params = tuple(init_params(k_p, dim_in, hidden_dims, cond_dims))

    out = odenet_forward(tc, y, params)
    out = jax.block_until_ready(out)
    assert out.shape == (B, dim_in), out.shape

    ref = odenet_reference(tc, y, params)
    assert jnp.allclose(out, ref, atol=1e-2, rtol=1e-2), (out, ref)

    print("KERNEL_OK")
</pallas_src>

<mosaic_0001>
module attributes {stable_mosaic.version = 11 : i64} {
  func.func @odenet_kernel(%arg0: i32, %arg1: memref<128x5xf32, #tpu.memory_space<vmem>>, %arg2: memref<128x4xf32, #tpu.memory_space<vmem>>, %arg3: memref<216x5xf32, #tpu.memory_space<vmem>>, %arg4: memref<216x1xf32, #tpu.memory_space<vmem>>, %arg5: memref<32x4xf32, #tpu.memory_space<vmem>>, %arg6: memref<32x32xf32, #tpu.memory_space<vmem>>, %arg7: memref<4x32xf32, #tpu.memory_space<vmem>>, %arg8: memref<128x4xf32, #tpu.memory_space<vmem>>) attributes {dimension_semantics = [#tpu.dimension_semantics<parallel>], iteration_bounds = array<i64: 1>, scalar_prefetch = 0 : i64, scratch_operands = 0 : i64, tpu.core_type = #tpu.core_type<tc>, window_params = [{transform_indices = @transform_0, window_bounds = array<i64: 128, 5>}, {transform_indices = @transform_1, window_bounds = array<i64: 128, 4>}, {pipeline_mode = #tpu.pipeline_mode<synchronous>, transform_indices = @transform_2, window_bounds = array<i64: 216, 5>}, {pipeline_mode = #tpu.pipeline_mode<synchronous>, transform_indices = @transform_3, window_bounds = array<i64: 216, 1>}, {pipeline_mode = #tpu.pipeline_mode<synchronous>, transform_indices = @transform_4, window_bounds = array<i64: 32, 4>}, {pipeline_mode = #tpu.pipeline_mode<synchronous>, transform_indices = @transform_5, window_bounds = array<i64: 32, 32>}, {pipeline_mode = #tpu.pipeline_mode<synchronous>, transform_indices = @transform_6, window_bounds = array<i64: 4, 32>}, {transform_indices = @transform_7, window_bounds = array<i64: 128, 4>}]} {
    %c0 = arith.constant 0 : index
    %c0_0 = arith.constant 0 : index
    %0 = vector.load %arg3[%c0, %c0_0] : memref<216x5xf32, #tpu.memory_space<vmem>>, vector<216x5xf32>
    %c0_1 = arith.constant 0 : index
    %c0_2 = arith.constant 0 : index
    %1 = vector.load %arg1[%c0_1, %c0_2] : memref<128x5xf32, #tpu.memory_space<vmem>>, vector<128x5xf32>
    %cst = arith.constant dense<0.000000e+00> : vector<216x128xf32>
    %2 = tpu.matmul %0, %1, %cst {dimension_numbers = #tpu.dot_dimension_numbers<[1], [1], [0], [0], [0, 0, 1, 0], [], []>} : vector<216x5xf32>, vector<128x5xf32>, vector<216x128xf32> -> vector<216x128xf32>
    %c0_3 = arith.constant 0 : index
    %c0_4 = arith.constant 0 : index
    %3 = vector.load %arg4[%c0_3, %c0_4] : memref<216x1xf32, #tpu.memory_space<vmem>>, vector<216x1xf32>
    %4 = vector.broadcast %3 : vector<216x1xf32> to vector<216x128xf32>
    %5 = arith.addf %2, %4 : vector<216x128xf32>
    %c0_5 = arith.constant 0 : index
    %c0_6 = arith.constant 0 : index
    %6 = vector.load %arg5[%c0_5, %c0_6] : memref<32x4xf32, #tpu.memory_space<vmem>>, vector<32x4xf32>
    %c0_7 = arith.constant 0 : index
    %c0_8 = arith.constant 0 : index
    %7 = vector.load %arg2[%c0_7, %c0_8] : memref<128x4xf32, #tpu.memory_space<vmem>>, vector<128x4xf32>
    %cst_9 = arith.constant dense<0.000000e+00> : vector<32x128xf32>
    %8 = tpu.matmul %6, %7, %cst_9 {dimension_numbers = #tpu.dot_dimension_numbers<[1], [1], [0], [0], [0, 0, 1, 0], [], []>} : vector<32x4xf32>, vector<128x4xf32>, vector<32x128xf32> -> vector<32x128xf32>
    %9 = vector.extract_strided_slice %5 {offsets = [0, 0], sizes = [32, 128], strides = [1, 1]} : vector<216x128xf32> to vector<32x128xf32>
    %10 = vector.extract_strided_slice %5 {offsets = [32, 0], sizes = [32, 128], strides = [1, 1]} : vector<216x128xf32> to vector<32x128xf32>
    %11 = vector.extract_strided_slice %5 {offsets = [64, 0], sizes = [32, 128], strides = [1, 1]} : vector<216x128xf32> to vector<32x128xf32>
    %cst_10 = arith.constant 5.000000e-01 : f32
    %12 = vector.broadcast %cst_10 : f32 to vector<32x128xf32>
    %13 = arith.mulf %12, %9 : vector<32x128xf32>
    %14 = math.tanh %13 : vector<32x128xf32>
    %cst_11 = arith.constant 5.000000e-01 : f32
    %15 = vector.broadcast %cst_11 : f32 to vector<32x128xf32>
    %16 = arith.mulf %15, %14 : vector<32x128xf32>
    %cst_12 = arith.constant 5.000000e-01 : f32
    %17 = vector.broadcast %cst_12 : f32 to vector<32x128xf32>
    %18 = arith.addf %16, %17 : vector<32x128xf32>
    %19 = arith.addf %8, %11 : vector<32x128xf32>
    %20 = arith.mulf %19, %18 : vector<32x128xf32>
    %21 = arith.addf %20, %10 : vector<32x128xf32>
    %cst_13 = arith.constant 0.000000e+00 : f32
    %22 = vector.broadcast %cst_13 : f32 to vector<32x128xf32>
    %23 = arith.maximumf %21, %22 : vector<32x128xf32>
    %24 = math.absf %21 : vector<32x128xf32>
    %cst_14 = arith.constant 0.000000e+00 : f32
    %25 = vector.broadcast %cst_14 : f32 to vector<32x128xf32>
    %26 = arith.subf %25, %24 : vector<32x128xf32>
    %27 = math.exp %26 : vector<32x128xf32>
    %cst_15 = arith.constant 1.000000e+00 : f32
    %28 = vector.broadcast %cst_15 : f32 to vector<32x128xf32>
    %29 = arith.addf %28, %27 : vector<32x128xf32>
    %30 = math.log %29 : vector<32x128xf32>
    %31 = arith.addf %23, %30 : vector<32x128xf32>
    %c0_16 = arith.constant 0 : index
    %c0_17 = arith.constant 0 : index
    %32 = vector.load %arg6[%c0_16, %c0_17] : memref<32x32xf32, #tpu.memory_space<vmem>>, vector<32x32xf32>
    %cst_18 = arith.constant dense<0.000000e+00> : vector<32x128xf32>
    %33 = tpu.matmul %32, %31, %cst_18 {dimension_numbers = #tpu.dot_dimension_numbers<[1], [0], [0], [1], [0, 0, 1, 1], [], []>} : vector<32x32xf32>, vector<32x128xf32>, vector<32x128xf32> -> vector<32x128xf32>
    %34 = vector.extract_strided_slice %5 {offsets = [96, 0], sizes = [32, 128], strides = [1, 1]} : vector<216x128xf32> to vector<32x128xf32>
    %35 = vector.extract_strided_slice %5 {offsets = [128, 0], sizes = [32, 128], strides = [1, 1]} : vector<216x128xf32> to vector<32x128xf32>
    %36 = vector.extract_strided_slice %5 {offsets = [160, 0], sizes = [32, 128], strides = [1, 1]} : vector<216x128xf32> to vector<32x128xf32>
    %cst_19 = arith.constant 5.000000e-01 : f32
    %37 = vector.broadcast %cst_19 : f32 to vector<32x128xf32>
    %38 = arith.mulf %37, %34 : vector<32x128xf32>
    %39 = math.tanh %38 : vector<32x128xf32>
    %cst_20 = arith.constant 5.000000e-01 : f32
    %40 = vector.broadcast %cst_20 : f32 to vector<32x128xf32>
    %41 = arith.mulf %40, %39 : vector<32x128xf32>
    %cst_21 = arith.constant 5.000000e-01 : f32
    %42 = vector.broadcast %cst_21 : f32 to vector<32x128xf32>
    %43 = arith.addf %41, %42 : vector<32x128xf32>
    %44 = arith.addf %33, %36 : vector<32x128xf32>
    %45 = arith.mulf %44, %43 : vector<32x128xf32>
    %46 = arith.addf %45, %35 : vector<32x128xf32>
    %cst_22 = arith.constant 0.000000e+00 : f32
    %47 = vector.broadcast %cst_22 : f32 to vector<32x128xf32>
    %48 = arith.maximumf %46, %47 : vector<32x128xf32>
    %49 = math.absf %46 : vector<32x128xf32>
    %cst_23 = arith.constant 0.000000e+00 : f32
    %50 = vector.broadcast %cst_23 : f32 to vector<32x128xf32>
    %51 = arith.subf %50, %49 : vector<32x128xf32>
    %52 = math.exp %51 : vector<32x128xf32>
    %cst_24 = arith.constant 1.000000e+00 : f32
    %53 = vector.broadcast %cst_24 : f32 to vector<32x128xf32>
    %54 = arith.addf %53, %52 : vector<32x128xf32>
    %55 = math.log %54 : vector<32x128xf32>
    %56 = arith.addf %48, %55 : vector<32x128xf32>
    %c0_25 = arith.constant 0 : index
    %c0_26 = arith.constant 0 : index
    %57 = vector.load %arg7[%c0_25, %c0_26] : memref<4x32xf32, #tpu.memory_space<vmem>>, vector<4x32xf32>
    %cst_27 = arith.constant dense<0.000000e+00> : vector<4x128xf32>
    %58 = tpu.matmul %57, %56, %cst_27 {dimension_numbers = #tpu.dot_dimension_numbers<[1], [0], [0], [1], [0, 0, 1, 1], [], []>} : vector<4x32xf32>, vector<32x128xf32>, vector<4x128xf32> -> vector<4x128xf32>
    %59 = vector.extract_strided_slice %5 {offsets = [192, 0], sizes = [4, 128], strides = [1, 1]} : vector<216x128xf32> to vector<4x128xf32>
    %60 = vector.extract_strided_slice %5 {offsets = [200, 0], sizes = [4, 128], strides = [1, 1]} : vector<216x128xf32> to vector<4x128xf32>
    %61 = vector.extract_strided_slice %5 {offsets = [208, 0], sizes = [4, 128], strides = [1, 1]} : vector<216x128xf32> to vector<4x128xf32>
    %cst_28 = arith.constant 5.000000e-01 : f32
    %62 = vector.broadcast %cst_28 : f32 to vector<4x128xf32>
    %63 = arith.mulf %62, %59 : vector<4x128xf32>
    %64 = math.tanh %63 : vector<4x128xf32>
    %cst_29 = arith.constant 5.000000e-01 : f32
    %65 = vector.broadcast %cst_29 : f32 to vector<4x128xf32>
    %66 = arith.mulf %65, %64 : vector<4x128xf32>
    %cst_30 = arith.constant 5.000000e-01 : f32
    %67 = vector.broadcast %cst_30 : f32 to vector<4x128xf32>
    %68 = arith.addf %66, %67 : vector<4x128xf32>
    %69 = arith.addf %58, %61 : vector<4x128xf32>
    %70 = arith.mulf %69, %68 : vector<4x128xf32>
    %71 = arith.addf %70, %60 : vector<4x128xf32>
    %72 = tpu.transpose %71, [1, 0] : vector<4x128xf32> -> vector<128x4xf32>
    %c0_31 = arith.constant 0 : index
    %c0_32 = arith.constant 0 : index
    %73 = vector.load %arg8[%c0_31, %c0_32] : memref<128x4xf32, #tpu.memory_space<vmem>>, vector<128x4xf32>
    tpu.vector_store %arg8[%c0_31, %c0_32], %72 {strides = array<i32>} : memref<128x4xf32, #tpu.memory_space<vmem>>, vector<128x4xf32>,
    return
  }
  func.func @transform_0(%arg0: i32) -> (i32, i32) {
    %c0_i32 = arith.constant 0 : i32
    %c0_i32_0 = arith.constant 0 : i32
    return %arg0, %c0_i32 : i32, i32
  }
  func.func @transform_1(%arg0: i32) -> (i32, i32) {
    %c0_i32 = arith.constant 0 : i32
    %c0_i32_0 = arith.constant 0 : i32
    return %arg0, %c0_i32 : i32, i32
  }
  func.func @transform_2(%arg0: i32) -> (i32, i32) {
    %c0_i32 = arith.constant 0 : i32
    %c0_i32_0 = arith.constant 0 : i32
    %c0_i32_1 = arith.constant 0 : i32
    return %c0_i32, %c0_i32_0 : i32, i32
  }
  func.func @transform_3(%arg0: i32) -> (i32, i32) {
    %c0_i32 = arith.constant 0 : i32
    %c0_i32_0 = arith.constant 0 : i32
    %c0_i32_1 = arith.constant 0 : i32
    return %c0_i32, %c0_i32_0 : i32, i32
  }
  func.func @transform_4(%arg0: i32) -> (i32, i32) {
    %c0_i32 = arith.constant 0 : i32
    %c0_i32_0 = arith.constant 0 : i32
    %c0_i32_1 = arith.constant 0 : i32
    return %c0_i32, %c0_i32_0 : i32, i32
  }
  func.func @transform_5(%arg0: i32) -> (i32, i32) {
    %c0_i32 = arith.constant 0 : i32
    %c0_i32_0 = arith.constant 0 : i32
    %c0_i32_1 = arith.constant 0 : i32
    return %c0_i32, %c0_i32_0 : i32, i32
  }
  func.func @transform_6(%arg0: i32) -> (i32, i32) {
    %c0_i32 = arith.constant 0 : i32
    %c0_i32_0 = arith.constant 0 : i32
    %c0_i32_1 = arith.constant 0 : i32
    return %c0_i32, %c0_i32_0 : i32, i32
  }
  func.func @transform_7(%arg0: i32) -> (i32, i32) {
    %c0_i32 = arith.constant 0 : i32
    %c0_i32_0 = arith.constant 0 : i32
    return %arg0, %c0_i32 : i32, i32
  }
}

</mosaic_0001>

<llo_original>
// kernel: odenet_forward.1
$region0: #{odenet_forward.1}
  #allocation0 [shape = 'u32[]', space=smem, size = 0x4, offset = 0x4, fixed_abs, tag = 'smem constant byte address 0x4 - core index']
  #allocation1 [shape = 'u32[72,128]{1,0:T(1,128)}', space=vmem, size = 0x9000, scoped, tag = 'internal scratch']
  %s0 = inlined_call_operand.vmem [shape: f32[128,5], index: 0, kind: input, shape index: {}]
  %s1 = inlined_call_operand.vmem [shape: f32[128,4], index: 1, kind: input, shape index: {}]
  %s2 = inlined_call_operand.vmem [shape: f32[216,5], index: 2, kind: input, shape index: {}]
  %s3 = inlined_call_operand.vmem [shape: f32[216,1], index: 3, kind: input, shape index: {}]
  %s4 = inlined_call_operand.vmem [shape: f32[32,4], index: 4, kind: input, shape index: {}]
  %s5 = inlined_call_operand.vmem [shape: f32[32,32], index: 5, kind: input, shape index: {}]
  %s6 = inlined_call_operand.vmem [shape: f32[4,32], index: 6, kind: input, shape index: {}]
  %s7 = inlined_call_operand.vmem [shape: f32[128,4], index: 7, kind: output, shape index: {}]
  %s8 = sld [smem:[#allocation0]]
  $region38: #{odenet_forward.1} parent=0
    _
  %s10 = ssub.s32 1, %s8
  %s11 = scalar_select 0, %s10, %s8
  // Predicated region
  $region2: #{odenet_forward.1} parent=0 // pred_check
    _
  $region3: #{odenet_forward.1} parent=0 // pred_check_branch
    %13 = sbr.rel (0) target = $region5
  $region4: #{odenet_forward.1} parent=0 // pred_region
    _
  $region5: #{odenet_forward.1} parent=0 // pred_fallthru
    _
  // Predicated region
  $region6: #{odenet_forward.1} parent=0 // pred_check
    _
  $region7: #{odenet_forward.1} parent=0 // pred_check_branch
    %15 = sbr.rel (0) target = $region9
  $region8: #{odenet_forward.1} parent=0 // pred_region
    _
  $region9: #{odenet_forward.1} parent=0 // pred_fallthru
    _
  // Predicated region
  $region10: #{odenet_forward.1} parent=0 // pred_check
    _
  $region11: #{odenet_forward.1} parent=0 // pred_check_branch
    %17 = sbr.rel (0) target = $region13
  $region12: #{odenet_forward.1} parent=0 // pred_region
    _
  $region13: #{odenet_forward.1} parent=0 // pred_fallthru
    _
  // Predicated region
  $region14: #{odenet_forward.1} parent=0 // pred_check
    _
  $region15: #{odenet_forward.1} parent=0 // pred_check_branch
    %19 = sbr.rel (0) target = $region17
  $region16: #{odenet_forward.1} parent=0 // pred_region
    _
  $region17: #{odenet_forward.1} parent=0 // pred_fallthru
    _
  // Predicated region
  $region18: #{odenet_forward.1} parent=0 // pred_check
    _
  $region19: #{odenet_forward.1} parent=0 // pred_check_branch
    %21 = sbr.rel (0) target = $region21
  $region20: #{odenet_forward.1} parent=0 // pred_region
    _
  $region21: #{odenet_forward.1} parent=0 // pred_fallthru
    _
  // Predicated region
  $region22: #{odenet_forward.1} parent=0 // pred_check
    _
  $region23: #{odenet_forward.1} parent=0 // pred_check_branch
    %23 = sbr.rel (0) target = $region25
  $region24: #{odenet_forward.1} parent=0 // pred_region
    _
  $region25: #{odenet_forward.1} parent=0 // pred_fallthru
    _
  // Predicated region
  $region26: #{odenet_forward.1} parent=0 // pred_check
    _
  $region27: #{odenet_forward.1} parent=0 // pred_check_branch
    %25 = sbr.rel (0) target = $region29
  $region28: #{odenet_forward.1} parent=0 // pred_region
    _
  $region29: #{odenet_forward.1} parent=0 // pred_fallthru
    _
  %v26 = vld [vmem:[%s2] sm:$0xff]
  %v27 = vld [vmem:[%s2 + $0x8] sm:$0xff]
  %v28 = vld [vmem:[%s2 + $0x10] sm:$0xff]
  %v29 = vld [vmem:[%s2 + $0x18] sm:$0xff]
  %v30 = vld [vmem:[%s2 + $0x20] sm:$0xff]
  %v31 = vld [vmem:[%s2 + $0x28] sm:$0xff]
  %v32 = vld [vmem:[%s2 + $0x30] sm:$0xff]
  %v33 = vld [vmem:[%s2 + $0x38] sm:$0xff]
  %v34 = vld [vmem:[%s2 + $0x40] sm:$0xff]
  %v35 = vld [vmem:[%s2 + $0x48] sm:$0xff]
  %v36 = vld [vmem:[%s2 + $0x50] sm:$0xff]
  %v37 = vld [vmem:[%s2 + $0x58] sm:$0xff]
  %v38 = vld [vmem:[%s2 + $0x60] sm:$0xff]
  %v39 = vld [vmem:[%s2 + $0x68] sm:$0xff]
  %v40 = vld [vmem:[%s2 + $0x70] sm:$0xff]
  %v41 = vld [vmem:[%s2 + $0x78] sm:$0xff]
  %v42 = vld [vmem:[%s2 + $0x80] sm:$0xff]
  %v43 = vld [vmem:[%s2 + $0x88] sm:$0xff]
  %v44 = vld [vmem:[%s2 + $0x90] sm:$0xff]
  %v45 = vld [vmem:[%s2 + $0x98] sm:$0xff]
  %v46 = vld [vmem:[%s2 + $0xa0] sm:$0xff]
  %v47 = vld [vmem:[%s2 + $0xa8] sm:$0xff]
  %v48 = vld [vmem:[%s2 + $0xb0] sm:$0xff]
  %v49 = vld [vmem:[%s2 + $0xb8] sm:$0xff]
  %v50 = vld [vmem:[%s2 + $0xc0] sm:$0xff]
  %v51 = vld [vmem:[%s2 + $0xc8] sm:$0xff]
  %v52 = vld [vmem:[%s2 + $0xd0] sm:$0xff]
  %v53 = vld [vmem:[%s0] sm:$0xff]
  %v54 = vld [vmem:[%s0 + $0x8] sm:$0xff]
  %v55 = vld [vmem:[%s0 + $0x10] sm:$0xff]
  %v56 = vld [vmem:[%s0 + $0x18] sm:$0xff]
  %v57 = vld [vmem:[%s0 + $0x20] sm:$0xff]
  %v58 = vld [vmem:[%s0 + $0x28] sm:$0xff]
  %v59 = vld [vmem:[%s0 + $0x30] sm:$0xff]
  %v60 = vld [vmem:[%s0 + $0x38] sm:$0xff]
  %v61 = vld [vmem:[%s0 + $0x40] sm:$0xff]
  %v62 = vld [vmem:[%s0 + $0x48] sm:$0xff]
  %v63 = vld [vmem:[%s0 + $0x50] sm:$0xff]
  %v64 = vld [vmem:[%s0 + $0x58] sm:$0xff]
  %v65 = vld [vmem:[%s0 + $0x60] sm:$0xff]
  %v66 = vld [vmem:[%s0 + $0x68] sm:$0xff]
  %v67 = vld [vmem:[%s0 + $0x70] sm:$0xff]
  %v68 = vld [vmem:[%s0 + $0x78] sm:$0xff]
  %v69 = vld [vmem:[%s3] sm:$0xff]
  %v70 = vld [vmem:[%s3 + $0x8] sm:$0xff]
  %v71 = vld [vmem:[%s3 + $0x10] sm:$0xff]
  %v72 = vld [vmem:[%s3 + $0x18] sm:$0xff]
  %v73 = vld [vmem:[%s3 + $0x20] sm:$0xff]
  %v74 = vld [vmem:[%s3 + $0x28] sm:$0xff]
  %v75 = vld [vmem:[%s3 + $0x30] sm:$0xff]
  %v76 = vld [vmem:[%s3 + $0x38] sm:$0xff]
  %v77 = vld [vmem:[%s3 + $0x40] sm:$0xff]
  %v78 = vld [vmem:[%s3 + $0x48] sm:$0xff]
  %v79 = vld [vmem:[%s3 + $0x50] sm:$0xff]
  %v80 = vld [vmem:[%s3 + $0x58] sm:$0xff]
  %v81 = vld [vmem:[%s3 + $0x60] sm:$0xff]
  %v82 = vld [vmem:[%s3 + $0x68] sm:$0xff]
  %v83 = vld [vmem:[%s3 + $0x70] sm:$0xff]
  %v84 = vld [vmem:[%s3 + $0x78] sm:$0xff]
  %v85 = vld [vmem:[%s3 + $0x80] sm:$0xff]
  %v86 = vld [vmem:[%s3 + $0x88] sm:$0xff]
  %v87 = vld [vmem:[%s3 + $0x90] sm:$0xff]
  %v88 = vld [vmem:[%s3 + $0x98] sm:$0xff]
  %v89 = vld [vmem:[%s3 + $0xa0] sm:$0xff]
  %v90 = vld [vmem:[%s3 + $0xa8] sm:$0xff]
  %v91 = vld [vmem:[%s3 + $0xb0] sm:$0xff]
  %v92 = vld [vmem:[%s3 + $0xb8] sm:$0xff]
  %v93 = vld [vmem:[%s3 + $0xc0] sm:$0xff]
  %v94 = vld [vmem:[%s3 + $0xc8] sm:$0xff]
  %v95 = vld [vmem:[%s3 + $0xd0] sm:$0xff]
  %97 = vset.pattern.permute.xlu0 0
  %98 = vperm.xlu0 %97, %v69
  %v99 = vpop.permute.xlu0 %98
  %102 = vset.pattern.permute.xlu0 0
  %103 = vperm.xlu0 %102, %v70
  %v104 = vpop.permute.xlu0 %103
  %107 = vset.pattern.permute.xlu0 0
  %108 = vperm.xlu0 %107, %v71
  %v109 = vpop.permute.xlu0 %108
  %112 = vset.pattern.permute.xlu0 0
  %113 = vperm.xlu0 %112, %v72
  %v114 = vpop.permute.xlu0 %113
  %117 = vset.pattern.permute.xlu0 0
  %118 = vperm.xlu0 %117, %v73
  %v119 = vpop.permute.xlu0 %118
  %122 = vset.pattern.permute.xlu0 0
  %123 = vperm.xlu0 %122, %v74
  %v124 = vpop.permute.xlu0 %123
  %127 = vset.pattern.permute.xlu0 0
  %128 = vperm.xlu0 %127, %v75
  %v129 = vpop.permute.xlu0 %128
  %132 = vset.pattern.permute.xlu0 0
  %133 = vperm.xlu0 %132, %v76
  %v134 = vpop.permute.xlu0 %133
  %137 = vset.pattern.permute.xlu0 0
  %138 = vperm.xlu0 %137, %v77
  %v139 = vpop.permute.xlu0 %138
  %142 = vset.pattern.permute.xlu0 0
  %143 = vperm.xlu0 %142, %v78
  %v144 = vpop.permute.xlu0 %143
  %147 = vset.pattern.permute.xlu0 0
  %148 = vperm.xlu0 %147, %v79
  %v149 = vpop.permute.xlu0 %148
  %152 = vset.pattern.permute.xlu0 0
  %153 = vperm.xlu0 %152, %v80
  %v154 = vpop.permute.xlu0 %153
  %157 = vset.pattern.permute.xlu0 0
  %158 = vperm.xlu0 %157, %v81
  %v159 = vpop.permute.xlu0 %158
  %162 = vset.pattern.permute.xlu0 0
  %163 = vperm.xlu0 %162, %v82
  %v164 = vpop.permute.xlu0 %163
  %167 = vset.pattern.permute.xlu0 0
  %168 = vperm.xlu0 %167, %v83
  %v169 = vpop.permute.xlu0 %168
  %172 = vset.pattern.permute.xlu0 0
  %173 = vperm.xlu0 %172, %v84
  %v174 = vpop.permute.xlu0 %173
  %177 = vset.pattern.permute.xlu0 0
  %178 = vperm.xlu0 %177, %v85
  %v179 = vpop.permute.xlu0 %178
  %182 = vset.pattern.permute.xlu0 0
  %183 = vperm.xlu0 %182, %v86
  %v184 = vpop.permute.xlu0 %183
  %187 = vset.pattern.permute.xlu0 0
  %188 = vperm.xlu0 %187, %v87
  %v189 = vpop.permute.xlu0 %188
  %192 = vset.pattern.permute.xlu0 0
  %193 = vperm.xlu0 %192, %v88
  %v194 = vpop.permute.xlu0 %193
  %197 = vset.pattern.permute.xlu0 0
  %198 = vperm.xlu0 %197, %v89
  %v199 = vpop.permute.xlu0 %198
  %202 = vset.pattern.permute.xlu0 0
  %203 = vperm.xlu0 %202, %v90
  %v204 = vpop.permute.xlu0 %203
  %207 = vset.pattern.permute.xlu0 0
  %208 = vperm.xlu0 %207, %v91
  %v209 = vpop.permute.xlu0 %208
  %212 = vset.pattern.permute.xlu0 0
  %213 = vperm.xlu0 %212, %v92
  %v214 = vpop.permute.xlu0 %213
  %217 = vset.pattern.permute.xlu0 0
  %218 = vperm.xlu0 %217, %v93
  %v219 = vpop.permute.xlu0 %218
  %222 = vset.pattern.permute.xlu0 0
  %223 = vperm.xlu0 %222, %v94
  %v224 = vpop.permute.xlu0 %223
  %227 = vset.pattern.permute.xlu0 0
  %228 = vperm.xlu0 %227, %v95
  %v229 = vpop.permute.xlu0 %228
  %vm231 = vcmask 39936
  %v233 = vsel %vm231, %v26, 0
  %v236 = vsel %vm231, %v27, 0
  %v239 = vsel %vm231, %v28, 0
  %v242 = vsel %vm231, %v29, 0
  %v245 = vsel %vm231, %v30, 0
  %v248 = vsel %vm231, %v31, 0
  %v251 = vsel %vm231, %v32, 0
  %v254 = vsel %vm231, %v33, 0
  %v257 = vsel %vm231, %v34, 0
  %v260 = vsel %vm231, %v35, 0
  %v263 = vsel %vm231, %v36, 0
  %v266 = vsel %vm231, %v37, 0
  %v269 = vsel %vm231, %v38, 0
  %v272 = vsel %vm231, %v39, 0
  %v275 = vsel %vm231, %v40, 0
  %v278 = vsel %vm231, %v41, 0
  %v281 = vsel %vm231, %v42, 0
  %v284 = vsel %vm231, %v43, 0
  %v287 = vsel %vm231, %v44, 0
  %v290 = vsel %vm231, %v45, 0
  %v293 = vsel %vm231, %v46, 0
  %v296 = vsel %vm231, %v47, 0
  %v299 = vsel %vm231, %v48, 0
  %v302 = vsel %vm231, %v49, 0
  %v305 = vsel %vm231, %v50, 0
  %v308 = vsel %vm231, %v51, 0
  %v311 = vsel %vm231, %v52, 0
  %v314 = vsel %vm231, %v53, 0
  %v317 = vsel %vm231, %v54, 0
  %v320 = vsel %vm231, %v55, 0
  %v323 = vsel %vm231, %v56, 0
  %v326 = vsel %vm231, %v57, 0
  %v329 = vsel %vm231, %v58, 0
  %v332 = vsel %vm231, %v59, 0
  %v335 = vsel %vm231, %v60, 0
  %v338 = vsel %vm231, %v61, 0
  %v341 = vsel %vm231, %v62, 0
  %v344 = vsel %vm231, %v63, 0
  %v347 = vsel %vm231, %v64, 0
  %v350 = vsel %vm231, %v65, 0
  %v353 = vsel %vm231, %v66, 0
  %v356 = vsel %vm231, %v67, 0
  %v359 = vsel %vm231, %v68, 0
  %361 = vmatpush.xpose.msra.mxu0 %v359
  %362 = vmatpush.xpose.msra.mxu0 %v356
  %363 = vmatpush.xpose.msra.mxu0 %v353
  %364 = vmatpush.xpose.msra.mxu0 %v350
  %365 = vmatpush.xpose.msra.mxu0 %v347
  %366 = vmatpush.xpose.msra.mxu0 %v344
  %367 = vmatpush.xpose.msra.mxu0 %v341
  %368 = vmatpush.xpose.msra.mxu0 %v338
  %369 = vmatpush.xpose.msra.mxu0 %v335
  %370 = vmatpush.xpose.msra.mxu0 %v332
  %371 = vmatpush.xpose.msra.mxu0 %v329
  %372 = vmatpush.xpose.msra.mxu0 %v326
  %373 = vmatpush.xpose.msra.mxu0 %v323
  %374 = vmatpush.xpose.msra.mxu0 %v320
  %375 = vmatpush.xpose.msra.mxu0 %v317
  %376 = vmatpush.xpose.msra.mxu0 %v314
  %377 = vmatmul.f32.gmra.mxu0 %v233
  %v378 = vpop.f32.mrf.mxu0
  %v379 = vadd.f32 %v99, %v378
  %380 = vmatmul.f32.gmra.mxu0 %v236
  %v381 = vpop.f32.mrf.mxu0
  %v382 = vadd.f32 %v104, %v381
  %383 = vmatmul.f32.gmra.mxu0 %v239
  %v384 = vpop.f32.mrf.mxu0
  %v385 = vadd.f32 %v109, %v384
  %386 = vmatmul.f32.gmra.mxu0 %v242
  %v387 = vpop.f32.mrf.mxu0
  %v388 = vadd.f32 %v114, %v387
  %389 = vmatmul.f32.gmra.mxu0 %v245
  %v390 = vpop.f32.mrf.mxu0
  %v391 = vadd.f32 %v119, %v390
  %392 = vmatmul.f32.gmra.mxu0 %v248
  %v393 = vpop.f32.mrf.mxu0
  %v394 = vadd.f32 %v124, %v393
  %395 = vmatmul.f32.gmra.mxu0 %v251
  %v396 = vpop.f32.mrf.mxu0
  %v397 = vadd.f32 %v129, %v396
  %398 = vmatmul.f32.gmra.mxu0 %v254
  %v399 = vpop.f32.mrf.mxu0
  %v400 = vadd.f32 %v134, %v399
  %401 = vmatmul.f32.gmra.mxu0 %v257
  %v402 = vpop.f32.mrf.mxu0
  %v403 = vadd.f32 %v139, %v402
  %404 = vmatmul.f32.gmra.mxu0 %v260
  %v405 = vpop.f32.mrf.mxu0
  %v406 = vadd.f32 %v144, %v405
  %407 = vmatmul.f32.gmra.mxu0 %v263
  %v408 = vpop.f32.mrf.mxu0
  %v409 = vadd.f32 %v149, %v408
  %410 = vmatmul.f32.gmra.mxu0 %v266
  %v411 = vpop.f32.mrf.mxu0
  %v412 = vadd.f32 %v154, %v411
  %413 = vmatmul.f32.gmra.mxu0 %v269
  %v414 = vpop.f32.mrf.mxu0
  %v415 = vadd.f32 %v159, %v414
  %416 = vmatmul.f32.gmra.mxu0 %v272
  %v417 = vpop.f32.mrf.mxu0
  %v418 = vadd.f32 %v164, %v417
  %419 = vmatmul.f32.gmra.mxu0 %v275
  %v420 = vpop.f32.mrf.mxu0
  %v421 = vadd.f32 %v169, %v420
  %422 = vmatmul.f32.gmra.mxu0 %v278
  %v423 = vpop.f32.mrf.mxu0
  %v424 = vadd.f32 %v174, %v423
  %425 = vmatmul.f32.gmra.mxu0 %v281
  %v426 = vpop.f32.mrf.mxu0
  %v427 = vadd.f32 %v179, %v426
  %428 = vmatmul.f32.gmra.mxu0 %v284
  %v429 = vpop.f32.mrf.mxu0
  %v430 = vadd.f32 %v184, %v429
  %431 = vmatmul.f32.gmra.mxu0 %v287
  %v432 = vpop.f32.mrf.mxu0
  %v433 = vadd.f32 %v189, %v432
  %434 = vmatmul.f32.gmra.mxu0 %v290
  %v435 = vpop.f32.mrf.mxu0
  %v436 = vadd.f32 %v194, %v435
  %437 = vmatmul.f32.gmra.mxu0 %v293
  %v438 = vpop.f32.mrf.mxu0
  %v439 = vadd.f32 %v199, %v438
  %440 = vmatmul.f32.gmra.mxu0 %v296
  %v441 = vpop.f32.mrf.mxu0
  %v442 = vadd.f32 %v204, %v441
  %443 = vmatmul.f32.gmra.mxu0 %v299
  %v444 = vpop.f32.mrf.mxu0
  %v445 = vadd.f32 %v209, %v444
  %446 = vmatmul.f32.gmra.mxu0 %v302
  %v447 = vpop.f32.mrf.mxu0
  %v448 = vadd.f32 %v214, %v447
  %449 = vmatmul.f32.gmra.mxu0 %v305
  %v450 = vpop.f32.mrf.mxu0
  %v451 = vadd.f32 %v219, %v450
  %452 = vmatmul.f32.gmra.mxu0 %v308
  %v453 = vpop.f32.mrf.mxu0
  %v454 = vadd.f32 %v224, %v453
  %455 = vmatmul.f32.gmra.mxu0 %v311
  %v456 = vpop.f32.mrf.mxu0
  %v457 = vadd.f32 %v229, %v456
  %458 = vdwg.mxu0
  %v459 = vld [vmem:[%s4] sm:$0xff]
  %v460 = vld [vmem:[%s4 + $0x8] sm:$0xff]
  %v461 = vld [vmem:[%s4 + $0x10] sm:$0xff]
  %v462 = vld [vmem:[%s4 + $0x18] sm:$0xff]
  %v463 = vld [vmem:[%s1] sm:$0xff]
  %v464 = vld [vmem:[%s1 + $0x8] sm:$0xff]
  %v465 = vld [vmem:[%s1 + $0x10] sm:$0xff]
  %v466 = vld [vmem:[%s1 + $0x18] sm:$0xff]
  %v467 = vld [vmem:[%s1 + $0x20] sm:$0xff]
  %v468 = vld [vmem:[%s1 + $0x28] sm:$0xff]
  %v469 = vld [vmem:[%s1 + $0x30] sm:$0xff]
  %v470 = vld [vmem:[%s1 + $0x38] sm:$0xff]
  %v471 = vld [vmem:[%s1 + $0x40] sm:$0xff]
  %v472 = vld [vmem:[%s1 + $0x48] sm:$0xff]
  %v473 = vld [vmem:[%s1 + $0x50] sm:$0xff]
  %v474 = vld [vmem:[%s1 + $0x58] sm:$0xff]
  %v475 = vld [vmem:[%s1 + $0x60] sm:$0xff]
  %v476 = vld [vmem:[%s1 + $0x68] sm:$0xff]
  %v477 = vld [vmem:[%s1 + $0x70] sm:$0xff]
  %v478 = vld [vmem:[%s1 + $0x78] sm:$0xff]
  %v479 = vmul.f32 %v379, 0.5
  %v480 = vmul.f32 %v382, 0.5
  %v481 = vmul.f32 %v385, 0.5
  %v482 = vmul.f32 %v388, 0.5
  %v483 = vtanh.pop %v479
  %v484 = vtanh.pop %v480
  %v485 = vtanh.pop %v481
  %v486 = vtanh.pop %v482
  %v487 = vmul.f32 %v483, 0.5
  %v488 = vmul.f32 %v484, 0.5
  %v489 = vmul.f32 %v485, 0.5
  %v490 = vmul.f32 %v486, 0.5
  %v491 = vadd.f32 %v487, 0.5
  %v492 = vadd.f32 %v488, 0.5
  %v493 = vadd.f32 %v489, 0.5
  %v494 = vadd.f32 %v490, 0.5
  %vm495 = vcmask 31744
  %v497 = vsel %vm495, %v459, 0
  %v500 = vsel %vm495, %v460, 0
  %v503 = vsel %vm495, %v461, 0
  %v506 = vsel %vm495, %v462, 0
  %v509 = vsel %vm495, %v463, 0
  %v512 = vsel %vm495, %v464, 0
  %v515 = vsel %vm495, %v465, 0
  %v518 = vsel %vm495, %v466, 0
  %v521 = vsel %vm495, %v467, 0
  %v524 = vsel %vm495, %v468, 0
  %v527 = vsel %vm495, %v469, 0
  %v530 = vsel %vm495, %v470, 0
  %v533 = vsel %vm495, %v471, 0
  %v536 = vsel %vm495, %v472, 0
  %v539 = vsel %vm495, %v473, 0
  %v542 = vsel %vm495, %v474, 0
  %v545 = vsel %vm495, %v475, 0
  %v548 = vsel %vm495, %v476, 0
  %v551 = vsel %vm495, %v477, 0
  %v554 = vsel %vm495, %v478, 0
  %556 = vmatpush.xpose.msra.mxu0 %v554
  %557 = vmatpush.xpose.msra.mxu0 %v551
  %558 = vmatpush.xpose.msra.mxu0 %v548
  %559 = vmatpush.xpose.msra.mxu0 %v545
  %560 = vmatpush.xpose.msra.mxu0 %v542
  %561 = vmatpush.xpose.msra.mxu0 %v539
  %562 = vmatpush.xpose.msra.mxu0 %v536
  %563 = vmatpush.xpose.msra.mxu0 %v533
  %564 = vmatpush.xpose.msra.mxu0 %v530
  %565 = vmatpush.xpose.msra.mxu0 %v527
  %566 = vmatpush.xpose.msra.mxu0 %v524
  %567 = vmatpush.xpose.msra.mxu0 %v521
  %568 = vmatpush.xpose.msra.mxu0 %v518
  %569 = vmatpush.xpose.msra.mxu0 %v515
  %570 = vmatpush.xpose.msra.mxu0 %v512
  %571 = vmatpush.xpose.msra.mxu0 %v509
  %572 = vmatmul.f32.gmra.mxu0 %v497
  %v573 = vpop.f32.mrf.mxu0
  %v574 = vadd.f32 %v403, %v573
  %575 = vmatmul.f32.gmra.mxu0 %v500
  %v576 = vpop.f32.mrf.mxu0
  %v577 = vadd.f32 %v406, %v576
  %578 = vmatmul.f32.gmra.mxu0 %v503
  %v579 = vpop.f32.mrf.mxu0
  %v580 = vadd.f32 %v409, %v579
  %581 = vmatmul.f32.gmra.mxu0 %v506
  %v582 = vpop.f32.mrf.mxu0
  %v583 = vadd.f32 %v412, %v582
  %584 = vdwg.mxu0
  %v585 = vmul.f32 %v574, %v491
  %v586 = vmul.f32 %v577, %v492
  %v587 = vmul.f32 %v580, %v493
  %v588 = vmul.f32 %v583, %v494
  %v589 = vadd.f32 %v585, %v391
  %v590 = vadd.f32 %v586, %v394
  %v591 = vadd.f32 %v587, %v397
  %v592 = vadd.f32 %v588, %v400
  %v593 = vmax.f32 %v589, 0.0
  %v594 = vmax.f32 %v590, 0.0
  %v595 = vmax.f32 %v591, 0.0
  %v596 = vmax.f32 %v592, 0.0
  %v597 = vand.u32 2147483647, %v589
  %v598 = vand.u32 2147483647, %v590
  %v599 = vand.u32 2147483647, %v591
  %v600 = vand.u32 2147483647, %v592
  %v601 = vsub.f32 0.0, %v597
  %v602 = vsub.f32 0.0, %v598
  %v603 = vsub.f32 0.0, %v599
  %v604 = vsub.f32 0.0, %v600
  %v605 = vmul.f32 %v601, 1.442695
  %v606 = vpow.pop %v605
  %v607 = vmul.f32 %v602, 1.442695
  %v608 = vpow.pop %v607
  %v609 = vmul.f32 %v603, 1.442695
  %v610 = vpow.pop %v609
  %v611 = vmul.f32 %v604, 1.442695
  %v612 = vpow.pop %v611
  %v613 = vadd.f32 %v606, 1.0
  %v614 = vadd.f32 %v608, 1.0
  %v615 = vadd.f32 %v610, 1.0
  %v616 = vadd.f32 %v612, 1.0
  %v617 = vlog2.pop %v613
  %v618 = vmul.f32 %v617, 0.6931472
  %v619 = vlog2.pop %v614
  %v620 = vmul.f32 %v619, 0.6931472
  %v621 = vlog2.pop %v615
  %v622 = vmul.f32 %v621, 0.6931472
  %v623 = vlog2.pop %v616
  %v624 = vmul.f32 %v623, 0.6931472
  %v625 = vadd.f32 %v593, %v618
  %v626 = vadd.f32 %v594, %v620
  %v627 = vadd.f32 %v595, %v622
  %v628 = vadd.f32 %v596, %v624
  %v629 = vld [vmem:[%s5] sm:$0xff]
  %v630 = vld [vmem:[%s5 + $0x8] sm:$0xff]
  %v631 = vld [vmem:[%s5 + $0x10] sm:$0xff]
  %v632 = vld [vmem:[%s5 + $0x18] sm:$0xff]
  %v633 = vmul.f32 %v415, 0.5
  %v634 = vmul.f32 %v418, 0.5
  %v635 = vmul.f32 %v421, 0.5
  %v636 = vmul.f32 %v424, 0.5
  %v637 = vtanh.pop %v633
  %v638 = vtanh.pop %v634
  %v639 = vtanh.pop %v635
  %v640 = vtanh.pop %v636
  %v641 = vmul.f32 %v637, 0.5
  %v642 = vmul.f32 %v638, 0.5
  %v643 = vmul.f32 %v639, 0.5
  %v644 = vmul.f32 %v640, 0.5
  %v645 = vadd.f32 %v641, 0.5
  %v646 = vadd.f32 %v642, 0.5
  %v647 = vadd.f32 %v643, 0.5
  %v648 = vadd.f32 %v644, 0.5
  %vm649 = vcmask 261120
  %v651 = vsel %vm649, %v629, 0
  %v654 = vsel %vm649, %v630, 0
  %v657 = vsel %vm649, %v631, 0
  %v660 = vsel %vm649, %v632, 0
  %662 = vmatpush.msra.mxu0 0.0
  %663 = vmatpush.msra.mxu0 0.0
  %664 = vmatpush.msra.mxu0 0.0
  %665 = vmatpush.msra.mxu0 0.0
  %666 = vmatpush.msra.mxu0 0.0
  %667 = vmatpush.msra.mxu0 0.0
  %668 = vmatpush.msra.mxu0 0.0
  %669 = vmatpush.msra.mxu0 0.0
  %670 = vmatpush.msra.mxu0 0.0
  %671 = vmatpush.msra.mxu0 0.0
  %672 = vmatpush.msra.mxu0 0.0
  %673 = vmatpush.msra.mxu0 0.0
  %674 = vmatpush.msra.mxu0 %v628
  %675 = vmatpush.msra.mxu0 %v627
  %676 = vmatpush.msra.mxu0 %v626
  %677 = vmatpush.msra.mxu0 %v625
  %678 = vmatmul.f32.gmra.mxu0 %v651
  %v679 = vpop.f32.mrf.mxu0
  %v680 = vadd.f32 %v439, %v679
  %681 = vmatmul.f32.gmra.mxu0 %v654
  %v682 = vpop.f32.mrf.mxu0
  %v683 = vadd.f32 %v442, %v682
  %684 = vmatmul.f32.gmra.mxu0 %v657
  %v685 = vpop.f32.mrf.mxu0
  %v686 = vadd.f32 %v445, %v685
  %687 = vmatmul.f32.gmra.mxu0 %v660
  %v688 = vpop.f32.mrf.mxu0
  %v689 = vadd.f32 %v448, %v688
  %690 = vdwg.mxu0
  %v691 = vmul.f32 %v680, %v645
  %v692 = vmul.f32 %v683, %v646
  %v693 = vmul.f32 %v686, %v647
  %v694 = vmul.f32 %v689, %v648
  %v695 = vadd.f32 %v691, %v427
  %v696 = vadd.f32 %v692, %v430
  %v697 = vadd.f32 %v693, %v433
  %v698 = vadd.f32 %v694, %v436
  %v699 = vmax.f32 %v695, 0.0
  %v700 = vmax.f32 %v696, 0.0
  %v701 = vmax.f32 %v697, 0.0
  %v702 = vmax.f32 %v698, 0.0
  %v703 = vand.u32 2147483647, %v695
  %v704 = vand.u32 2147483647, %v696
  %v705 = vand.u32 2147483647, %v697
  %v706 = vand.u32 2147483647, %v698
  %v707 = vsub.f32 0.0, %v703
  %v708 = vsub.f32 0.0, %v704
  %v709 = vsub.f32 0.0, %v705
  %v710 = vsub.f32 0.0, %v706
  %v711 = vmul.f32 %v707, 1.442695
  %v712 = vpow.pop %v711
  %v713 = vmul.f32 %v708, 1.442695
  %v714 = vpow.pop %v713
  %v715 = vmul.f32 %v709, 1.442695
  %v716 = vpow.pop %v715
  %v717 = vmul.f32 %v710, 1.442695
  %v718 = vpow.pop %v717
  %v719 = vadd.f32 %v712, 1.0
  %v720 = vadd.f32 %v714, 1.0
  %v721 = vadd.f32 %v716, 1.0
  %v722 = vadd.f32 %v718, 1.0
  %v723 = vlog2.pop %v719
  %v724 = vmul.f32 %v723, 0.6931472
  %v725 = vlog2.pop %v720
  %v726 = vmul.f32 %v725, 0.6931472
  %v727 = vlog2.pop %v721
  %v728 = vmul.f32 %v727, 0.6931472
  %v729 = vlog2.pop %v722
  %v730 = vmul.f32 %v729, 0.6931472
  %v731 = vadd.f32 %v699, %v724
  %v732 = vadd.f32 %v700, %v726
  %v733 = vadd.f32 %v701, %v728
  %v734 = vadd.f32 %v702, %v730
  %v735 = vld [vmem:[%s6] sm:$0xf]
  %v736 = vmul.f32 %v451, 0.5
  %v737 = vtanh.pop %v736
  %v738 = vmul.f32 %v737, 0.5
  %v739 = vadd.f32 %v738, 0.5
  %v741 = vsel %vm649, %v735, 0
  %743 = vmatpush.msra.mxu0 0.0
  %744 = vmatpush.msra.mxu0 0.0
  %745 = vmatpush.msra.mxu0 0.0
  %746 = vmatpush.msra.mxu0 0.0
  %747 = vmatpush.msra.mxu0 0.0
  %748 = vmatpush.msra.mxu0 0.0
  %749 = vmatpush.msra.mxu0 0.0
  %750 = vmatpush.msra.mxu0 0.0
  %751 = vmatpush.msra.mxu0 0.0
  %752 = vmatpush.msra.mxu0 0.0
  %753 = vmatpush.msra.mxu0 0.0
  %754 = vmatpush.msra.mxu0 0.0
  %755 = vmatpush.msra.mxu0 %v734
  %756 = vmatpush.msra.mxu0 %v733
  %757 = vmatpush.msra.mxu0 %v732
  %758 = vmatpush.msra.mxu0 %v731
  %759 = vmatmul.f32.gmra.mxu0 %v741
  %v760 = vpop.f32.mrf.mxu0
  %v761 = vadd.f32 %v457, %v760
  %762 = vdwg.mxu0
  %v763 = vmul.f32 %v761, %v739
  %v764 = vadd.f32 %v763, %v454
  %765 = vxpose.xlu0.b32.start [1/16] %v764, 128
  %766 = vxpose.xlu0.b32.cont [2/16] 0.0, 128
  %767 = vxpose.xlu0.b32.cont [3/16] 0.0, 128
  %768 = vxpose.xlu0.b32.cont [4/16] 0.0, 128
  %769 = vxpose.xlu0.b32.cont [5/16] 0.0, 128
  %770 = vxpose.xlu0.b32.cont [6/16] 0.0, 128
  %771 = vxpose.xlu0.b32.cont [7/16] 0.0, 128
  %772 = vxpose.xlu0.b32.cont [8/16] 0.0, 128
  %773 = vxpose.xlu0.b32.cont [9/16] 0.0, 128
  %774 = vxpose.xlu0.b32.cont [10/16] 0.0, 128
  %775 = vxpose.xlu0.b32.cont [11/16] 0.0, 128
  %776 = vxpose.xlu0.b32.cont [12/16] 0.0, 128
  %777 = vxpose.xlu0.b32.cont [13/16] 0.0, 128
  %778 = vxpose.xlu0.b32.cont [14/16] 0.0, 128
  %779 = vxpose.xlu0.b32.cont [15/16] 0.0, 128
  %780 = vxpose.xlu0.b32.end [16/16] 0.0, 128
  %v781 = vpop.trf.xlu0
  %v782 = vpop.trf.xlu0
  %v783 = vpop.trf.xlu0
  %v784 = vpop.trf.xlu0
  %v785 = vpop.trf.xlu0
  %v786 = vpop.trf.xlu0
  %v787 = vpop.trf.xlu0
  %v788 = vpop.trf.xlu0
  %v789 = vpop.trf.xlu0
  %v790 = vpop.trf.xlu0
  %v791 = vpop.trf.xlu0
  %v792 = vpop.trf.xlu0
  %v793 = vpop.trf.xlu0
  %v794 = vpop.trf.xlu0
  %v795 = vpop.trf.xlu0
  %v796 = vpop.trf.xlu0
  %797 = vst.msk [vmem:[%s7] sm:$0xff] %vm495, %v781
  %798 = vst.msk [vmem:[%s7 + $0x8] sm:$0xff] %vm495, %v782
  %799 = vst.msk [vmem:[%s7 + $0x10] sm:$0xff] %vm495, %v783
  %800 = vst.msk [vmem:[%s7 + $0x18] sm:$0xff] %vm495, %v784
  %801 = vst.msk [vmem:[%s7 + $0x20] sm:$0xff] %vm495, %v785
  %802 = vst.msk [vmem:[%s7 + $0x28] sm:$0xff] %vm495, %v786
  %803 = vst.msk [vmem:[%s7 + $0x30] sm:$0xff] %vm495, %v787
  %804 = vst.msk [vmem:[%s7 + $0x38] sm:$0xff] %vm495, %v788
  %805 = vst.msk [vmem:[%s7 + $0x40] sm:$0xff] %vm495, %v789
  %806 = vst.msk [vmem:[%s7 + $0x48] sm:$0xff] %vm495, %v790
  %807 = vst.msk [vmem:[%s7 + $0x50] sm:$0xff] %vm495, %v791
  %808 = vst.msk [vmem:[%s7 + $0x58] sm:$0xff] %vm495, %v792
  %809 = vst.msk [vmem:[%s7 + $0x60] sm:$0xff] %vm495, %v793
  %810 = vst.msk [vmem:[%s7 + $0x68] sm:$0xff] %vm495, %v794
  %811 = vst.msk [vmem:[%s7 + $0x70] sm:$0xff] %vm495, %v795
  %812 = vst.msk [vmem:[%s7 + $0x78] sm:$0xff] %vm495, %v796
  // Predicated region
  $region30: #{odenet_forward.1} parent=0 // pred_check
    _
  $region31: #{odenet_forward.1} parent=0 // pred_check_branch
    %814 = sbr.rel (0) target = $region33
  $region32: #{odenet_forward.1} parent=0 // pred_region
    _
  $region33: #{odenet_forward.1} parent=0 // pred_fallthru
    _
  // Predicated region
  $region34: #{odenet_forward.1} parent=0 // pred_check
    _
  $region35: #{odenet_forward.1} parent=0 // pred_check_branch
    %816 = sbr.rel (0) target = $region37
  $region36: #{odenet_forward.1} parent=0 // pred_region
    _
  $region37: #{odenet_forward.1} parent=0 // pred_fallthru
    _

</llo_original>
